<compile_context>
chip_gen: v7x
topology: tpu7x:2x2x1
jax: 0.10.0
libtpu: 0.0.40
codegen_flags: <defaults>
</compile_context>

<pallas_src>
import jax
import jax.numpy as jnp
from jax import lax
from jax.experimental import pallas as pl
from jax.experimental.pallas import tpu as pltpu

# ---- problem sizes (small, consistent with a tiny BERT config) ----
B = 2            # batch
S = 8            # sequence length
HEADS = 4        # num_attention_heads
HEAD_DIM = 8     # attention_head_size
HIDDEN = HEADS * HEAD_DIM   # hidden_size = 32
EPS = 1e-12      # torch.nn.functional.normalize eps


def _bert_cos_attn_kernel(x_ref, scale_ref, wb_ref, bd_ref, out_ref):
    """Single grid step over the whole (tiny) batch.

    x_ref:     (B*S, HIDDEN)            VMEM  hidden_states, rows = batch*seq
    scale_ref: (B*S, 3*HIDDEN)          VMEM  per-row/per-col scale:
                                              cols [0:2H)  = keep (Q/K mask)
                                              cols [2H:3H) = keep / denom (V)
    wb_ref:    (HIDDEN+1, 3*HIDDEN)     VMEM  rows 0..H-1 = [Wq^T|Wk^T|Wv^T],
                                              row H       = [bq|bk|bv]
    bd_ref:    (2*HIDDEN, 2*HIDDEN)     VMEM  8-wide block-diagonal constant
    out_ref:   (B*S, HIDDEN)            VMEM  context_layer rows
    """
    rows, h = x_ref.shape
    h2, h3 = 2 * h, 3 * h
    nbatch = rows // S

    w = wb_ref[:h, :]                      # (H, 3H)   fused QKV weight
    bias = wb_ref[h:h + 1, :]              # (1, 3H)   fused QKV bias

    # MXU push #1: fused Q|K|V projection + bias, then the precomputed
    # per-row scale (keep mask for Q/K, keep/denominator for V).
    qkv = (jnp.dot(x_ref[...], w, preferred_element_type=jnp.float32)
           + bias) * scale_ref[...]                                    # (rows, 3H)

    # MXU push #2: per-head sum-of-squares for Q and K together via the
    # block-diagonal constant; rsqrt on the EUP; scale back.
    # rsqrt(max(ss, EPS^2)) == 1 / max(sqrt(ss), EPS)  ==  F.normalize(p=2).
    qk = qkv[:, :h2]                                                   # (rows, 2H)
    ss = jnp.dot(qk * qk, bd_ref[...], preferred_element_type=jnp.float32)
    qk = qk * lax.rsqrt(jnp.maximum(ss, EPS * EPS))

    qn = qk[:, :h]                                                     # (rows, H)
    kn = qk[:, h:]                                                     # (rows, H)
    v = qkv[:, h2:]                                                    # (rows, H)
    kv_mask = bd_ref[:h, :h]                                           # (H, H)

    # Cosine attention, all heads at once: ctx = Qn @ blockdiag(Kn^T @ V).
    # Zeroing the off-diagonal head blocks makes this exactly the per-head
    # Q (K^T V) of the reference (the HEAD_DIM > S branch is just the other
    # association of the same product).  The contractions must not mix tokens
    # across batch elements, so the batch is statically unrolled (nbatch == 2);
    # the two per-batch chains are independent and pipeline through the MXU.
    ctx_parts = []
    for bi in range(nbatch):
        r0, r1 = bi * S, (bi + 1) * S
        kv = lax.dot_general(kn[r0:r1], v[r0:r1], (((0,), (0,)), ((), ())),
                             preferred_element_type=jnp.float32)       # (H, H)
        ctx_parts.append(jnp.dot(qn[r0:r1], kv * kv_mask,
                                 preferred_element_type=jnp.float32))  # (S, H)

    # Single full-block store.
    out_ref[...] = jnp.concatenate(ctx_parts, axis=0).astype(out_ref.dtype)


def bert_cos_attention(hidden_states, attention_mask, wq, bq, wk, bk, wv, bv, norm_const):
    """hidden_states: (B, S, HIDDEN) f32; attention_mask: (B, 1, 1, S) extended mask."""
    b, s, hd = hidden_states.shape
    assert (s, hd) == (S, HIDDEN)
    f32 = jnp.float32

    # --- tiny mask-derived precompute (O(B*S + B*HEADS); XLA fuses it) ------
    # Matches the reference semantics exactly: keep = (attention_mask == 0).
    keep4 = (attention_mask == 0)                                     # (B,1,1,S) bool
    keep = jnp.swapaxes(keep4[:, 0].astype(f32), -1, -2)              # (B,S,1)

    # 1 / clamp(count ** sigmoid(norm_const), min=1) per (batch, head),
    # broadcast to full hidden width.
    cnt = keep4.astype(f32).sum(-1, keepdims=True)                    # (B,1,1,1)
    sig = jax.nn.sigmoid(norm_const.astype(f32))                      # (1,HEADS,1,1)
    inv_head = 1.0 / jnp.maximum(cnt ** sig, 1.0)                     # (B,HEADS,1,1)
    inv_full = jnp.repeat(inv_head.reshape(b, HEADS), HEAD_DIM, axis=-1)  # (B,HIDDEN)

    # Per-row / per-column scale for the fused QKV projection output.
    scale = jnp.concatenate(
        [jnp.broadcast_to(keep, (b, S, 2 * HIDDEN)),                  # Q|K: keep
         keep * inv_full[:, None, :]],                                # V: keep/denom
        axis=-1).reshape(b * S, 3 * HIDDEN)                           # (B*S, 3H)

    # Fused, pre-transposed QKV weight (x @ Wqkv == Linear(x)) with the bias
    # packed as a trailing row -> one input, one DMA.
    wqkv = jnp.concatenate([wq.T, wk.T, wv.T], axis=1)                # (H, 3H)
    bqkv = jnp.concatenate([bq, bk, bv]).reshape(1, 3 * HIDDEN)       # (1, 3H)
    wqkv_b = jnp.concatenate([wqkv, bqkv], axis=0).astype(f32)        # (H+1, 3H)

    # 8-wide block-diagonal constant: per-head segments for the fused Q|K
    # normalization; its top-left HIDDENxHIDDEN quadrant is the per-head mask
    # for Kn^T V.
    idx = jnp.arange(2 * HIDDEN)
    bd = (idx[:, None] // HEAD_DIM == idx[None, :] // HEAD_DIM).astype(f32)  # (2H,2H)

    x2 = hidden_states.astype(f32).reshape(b * S, HIDDEN)

    out2 = pl.pallas_call(
        _bert_cos_attn_kernel,
        out_shape=jax.ShapeDtypeStruct((b * S, HIDDEN), hidden_states.dtype),
        grid=(1,),   # whole batch in one step: per-step overhead dominates here
        in_specs=[
            pl.BlockSpec((b * S, HIDDEN), lambda i: (0, 0)),             # x rows
            pl.BlockSpec((b * S, 3 * HIDDEN), lambda i: (0, 0)),         # scale rows
            pl.BlockSpec((HIDDEN + 1, 3 * HIDDEN), lambda i: (0, 0)),    # Wqkv | bias
            pl.BlockSpec((2 * HIDDEN, 2 * HIDDEN), lambda i: (0, 0)),    # block-diag
        ],
        out_specs=pl.BlockSpec((b * S, HIDDEN), lambda i: (0, 0)),
        compiler_params=pltpu.CompilerParams(dimension_semantics=("arbitrary",)),
    )(x2, scale, wqkv_b, bd)

    return out2.reshape(b, S, HIDDEN)   # free metadata reshape in the wrapper


def reference(hidden_states, attention_mask, wq, bq, wk, bk, wv, bv, norm_const):
    """Plain-JAX transcription of the PyTorch forward (default path)."""
    bsz = hidden_states.shape[0]

    def linear(x, w, bias):  # torch nn.Linear: x @ W^T + b, W is (out, in)
        return x @ w.T + bias

    def split_heads(t):
        return t.reshape(bsz, S, HEADS, HEAD_DIM).transpose(0, 2, 1, 3)

    q = split_heads(linear(hidden_states, wq, bq))
    k = split_heads(linear(hidden_states, wk, bk))
    v = split_heads(linear(hidden_states, wv, bv))

    keep = (attention_mask == 0)                              # (B,1,1,S) bool
    keep_t = jnp.swapaxes(keep, -1, -2).astype(q.dtype)       # (B,1,S,1)
    q = q * keep_t
    k = k * keep_t
    v = v * keep_t

    q = q / jnp.maximum(jnp.sqrt(jnp.sum(q * q, axis=-1, keepdims=True)), EPS)
    k = k / jnp.maximum(jnp.sqrt(jnp.sum(k * k, axis=-1, keepdims=True)), EPS)

    cnt = keep.astype(jnp.float32).sum(-1)[..., None]         # (B,1,1,1)
    sig = jax.nn.sigmoid(norm_const)                          # (1,H,1,1)
    v = v / jnp.maximum(cnt ** sig, 1.0)

    if HEAD_DIM > S:
        ctx = jnp.einsum('nhsq,nhqw->nhsw', jnp.einsum('nhse,nhqe->nhsq', q, k), v)
    else:
        ctx = jnp.einsum('nhsw,nhwe->nhse', q, jnp.einsum('nhse,nhsw->nhew', k, v))

    ctx = ctx.transpose(0, 2, 1, 3).reshape(bsz, S, HIDDEN)
    return ctx


if __name__ == "__main__":
    key = jax.random.PRNGKey(0)
    k_x, k_wq, k_wk, k_wv, k_bq, k_bk, k_bv = jax.random.split(key, 7)

    hidden_states = jax.random.normal(k_x, (B, S, HIDDEN), dtype=jnp.float32)

    # deterministic synthetic parameters (PyTorch shapes: Linear W is (out, in))
    wq = 0.02 * jax.random.normal(k_wq, (HIDDEN, HIDDEN), dtype=jnp.float32)
    wk = 0.02 * jax.random.normal(k_wk, (HIDDEN, HIDDEN), dtype=jnp.float32)
    wv = 0.02 * jax.random.normal(k_wv, (HIDDEN, HIDDEN), dtype=jnp.float32)
    bq = 0.02 * jax.random.normal(k_bq, (HIDDEN,), dtype=jnp.float32)
    bk = 0.02 * jax.random.normal(k_bk, (HIDDEN,), dtype=jnp.float32)
    bv = 0.02 * jax.random.normal(k_bv, (HIDDEN,), dtype=jnp.float32)
    norm_const = 0.5 * jnp.ones((1, HEADS, 1, 1), dtype=jnp.float32)

    # HF-style extended attention mask: 0.0 = keep, -10000.0 = masked.
    attention_mask = jnp.zeros((B, 1, 1, S), dtype=jnp.float32)
    attention_mask = attention_mask.at[1, 0, 0, 5:].set(-10000.0)   # mask last 3 of batch 1

    out = bert_cos_attention(hidden_states, attention_mask,
                             wq, bq, wk, bk, wv, bv, norm_const)
    out = jax.block_until_ready(out)

    ref = reference(hidden_states, attention_mask,
                    wq, bq, wk, bk, wv, bv, norm_const)

    assert out.shape == (B, S, HIDDEN)
    assert jnp.allclose(out, ref, atol=1e-5, rtol=1e-5), \
        f"max abs err = {jnp.max(jnp.abs(out - ref))}"

    print("KERNEL_OK")
</pallas_src>

<mosaic_0001>
module attributes {stable_mosaic.version = 11 : i64} {
  func.func @_bert_cos_attn_kernel(%arg0: i32, %arg1: memref<16x32xf32, #tpu.memory_space<vmem>>, %arg2: memref<16x96xf32, #tpu.memory_space<vmem>>, %arg3: memref<33x96xf32, #tpu.memory_space<vmem>>, %arg4: memref<64x64xf32, #tpu.memory_space<vmem>>, %arg5: memref<16x32xf32, #tpu.memory_space<vmem>>) attributes {dimension_semantics = [#tpu.dimension_semantics<arbitrary>], iteration_bounds = array<i64: 1>, scalar_prefetch = 0 : i64, scratch_operands = 0 : i64, tpu.core_type = #tpu.core_type<tc>, window_params = [{pipeline_mode = #tpu.pipeline_mode<synchronous>, transform_indices = @transform_0, window_bounds = array<i64: 16, 32>}, {pipeline_mode = #tpu.pipeline_mode<synchronous>, transform_indices = @transform_1, window_bounds = array<i64: 16, 96>}, {pipeline_mode = #tpu.pipeline_mode<synchronous>, transform_indices = @transform_2, window_bounds = array<i64: 33, 96>}, {pipeline_mode = #tpu.pipeline_mode<synchronous>, transform_indices = @transform_3, window_bounds = array<i64: 64, 64>}, {pipeline_mode = #tpu.pipeline_mode<synchronous>, transform_indices = @transform_4, window_bounds = array<i64: 16, 32>}]} {
    %c0 = arith.constant 0 : index
    %c0_0 = arith.constant 0 : index
    %0 = vector.load %arg3[%c0, %c0_0] : memref<33x96xf32, #tpu.memory_space<vmem>>, vector<32x96xf32>
    %c32 = arith.constant 32 : index
    %c0_1 = arith.constant 0 : index
    %1 = vector.load %arg3[%c32, %c0_1] : memref<33x96xf32, #tpu.memory_space<vmem>>, vector<1x96xf32>
    %c0_2 = arith.constant 0 : index
    %c0_3 = arith.constant 0 : index
    %2 = vector.load %arg1[%c0_2, %c0_3] : memref<16x32xf32, #tpu.memory_space<vmem>>, vector<16x32xf32>
    %cst = arith.constant dense<0.000000e+00> : vector<16x96xf32>
    %3 = tpu.matmul %2, %0, %cst {dimension_numbers = #tpu.dot_dimension_numbers<[1], [0], [0], [1], [0, 0, 1, 1], [], []>} : vector<16x32xf32>, vector<32x96xf32>, vector<16x96xf32> -> vector<16x96xf32>
    %4 = vector.broadcast %1 : vector<1x96xf32> to vector<16x96xf32>
    %5 = arith.addf %3, %4 : vector<16x96xf32>
    %c0_4 = arith.constant 0 : index
    %c0_5 = arith.constant 0 : index
    %6 = vector.load %arg2[%c0_4, %c0_5] : memref<16x96xf32, #tpu.memory_space<vmem>>, vector<16x96xf32>
    %7 = arith.mulf %5, %6 : vector<16x96xf32>
    %8 = vector.extract_strided_slice %7 {offsets = [0, 0], sizes = [16, 64], strides = [1, 1]} : vector<16x96xf32> to vector<16x64xf32>
    %9 = arith.mulf %8, %8 : vector<16x64xf32>
    %c0_6 = arith.constant 0 : index
    %c0_7 = arith.constant 0 : index
    %10 = vector.load %arg4[%c0_6, %c0_7] : memref<64x64xf32, #tpu.memory_space<vmem>>, vector<64x64xf32>
    %cst_8 = arith.constant dense<0.000000e+00> : vector<16x64xf32>
    %11 = tpu.matmul %9, %10, %cst_8 {dimension_numbers = #tpu.dot_dimension_numbers<[1], [0], [0], [1], [0, 0, 1, 1], [], []>} : vector<16x64xf32>, vector<64x64xf32>, vector<16x64xf32> -> vector<16x64xf32>
    %cst_9 = arith.constant 1.000000e-24 : f32
    %12 = vector.broadcast %cst_9 : f32 to vector<16x64xf32>
    %13 = arith.maximumf %11, %12 : vector<16x64xf32>
    %14 = math.rsqrt %13 : vector<16x64xf32>
    %15 = arith.mulf %8, %14 : vector<16x64xf32>
    %16 = vector.extract_strided_slice %15 {offsets = [0, 0], sizes = [16, 32], strides = [1, 1]} : vector<16x64xf32> to vector<16x32xf32>
    %17 = vector.extract_strided_slice %15 {offsets = [0, 32], sizes = [16, 32], strides = [1, 1]} : vector<16x64xf32> to vector<16x32xf32>
    %18 = vector.extract_strided_slice %7 {offsets = [0, 64], sizes = [16, 32], strides = [1, 1]} : vector<16x96xf32> to vector<16x32xf32>
    %c0_10 = arith.constant 0 : index
    %c0_11 = arith.constant 0 : index
    %19 = vector.load %arg4[%c0_10, %c0_11] : memref<64x64xf32, #tpu.memory_space<vmem>>, vector<32x32xf32>
    %20 = vector.extract_strided_slice %17 {offsets = [0, 0], sizes = [8, 32], strides = [1, 1]} : vector<16x32xf32> to vector<8x32xf32>
    %21 = vector.extract_strided_slice %18 {offsets = [0, 0], sizes = [8, 32], strides = [1, 1]} : vector<16x32xf32> to vector<8x32xf32>
    %cst_12 = arith.constant dense<0.000000e+00> : vector<32x32xf32>
    %22 = tpu.matmul %20, %21, %cst_12 {dimension_numbers = #tpu.dot_dimension_numbers<[0], [0], [1], [1], [0, 1, 1, 1], [], []>} : vector<8x32xf32>, vector<8x32xf32>, vector<32x32xf32> -> vector<32x32xf32>
    %23 = vector.extract_strided_slice %16 {offsets = [0, 0], sizes = [8, 32], strides = [1, 1]} : vector<16x32xf32> to vector<8x32xf32>
    %24 = arith.mulf %22, %19 : vector<32x32xf32>
    %cst_13 = arith.constant dense<0.000000e+00> : vector<8x32xf32>
    %25 = tpu.matmul %23, %24, %cst_13 {dimension_numbers = #tpu.dot_dimension_numbers<[1], [0], [0], [1], [0, 0, 1, 1], [], []>} : vector<8x32xf32>, vector<32x32xf32>, vector<8x32xf32> -> vector<8x32xf32>
    %26 = vector.extract_strided_slice %17 {offsets = [8, 0], sizes = [8, 32], strides = [1, 1]} : vector<16x32xf32> to vector<8x32xf32>
    %27 = vector.extract_strided_slice %18 {offsets = [8, 0], sizes = [8, 32], strides = [1, 1]} : vector<16x32xf32> to vector<8x32xf32>
    %cst_14 = arith.constant dense<0.000000e+00> : vector<32x32xf32>
    %28 = tpu.matmul %26, %27, %cst_14 {dimension_numbers = #tpu.dot_dimension_numbers<[0], [0], [1], [1], [0, 1, 1, 1], [], []>} : vector<8x32xf32>, vector<8x32xf32>, vector<32x32xf32> -> vector<32x32xf32>
    %29 = vector.extract_strided_slice %16 {offsets = [8, 0], sizes = [8, 32], strides = [1, 1]} : vector<16x32xf32> to vector<8x32xf32>
    %30 = arith.mulf %28, %19 : vector<32x32xf32>
    %cst_15 = arith.constant dense<0.000000e+00> : vector<8x32xf32>
    %31 = tpu.matmul %29, %30, %cst_15 {dimension_numbers = #tpu.dot_dimension_numbers<[1], [0], [0], [1], [0, 0, 1, 1], [], []>} : vector<8x32xf32>, vector<32x32xf32>, vector<8x32xf32> -> vector<8x32xf32>
    %32 = tpu.concatenate %25, %31 in 0 : vector<8x32xf32>, vector<8x32xf32> -> vector<16x32xf32>
    %c0_16 = arith.constant 0 : index
    %c0_17 = arith.constant 0 : index
    %33 = vector.load %arg5[%c0_16, %c0_17] : memref<16x32xf32, #tpu.memory_space<vmem>>, vector<16x32xf32>
    tpu.vector_store %arg5[%c0_16, %c0_17], %32 {strides = array<i32>} : memref<16x32xf32, #tpu.memory_space<vmem>>, vector<16x32xf32>,
    return
  }
  func.func @transform_0(%arg0: i32) -> (i32, i32) {
    %c0_i32 = arith.constant 0 : i32
    %c0_i32_0 = arith.constant 0 : i32
    %c0_i32_1 = arith.constant 0 : i32
    return %c0_i32, %c0_i32_0 : i32, i32
  }
  func.func @transform_1(%arg0: i32) -> (i32, i32) {
    %c0_i32 = arith.constant 0 : i32
    %c0_i32_0 = arith.constant 0 : i32
    %c0_i32_1 = arith.constant 0 : i32
    return %c0_i32, %c0_i32_0 : i32, i32
  }
  func.func @transform_2(%arg0: i32) -> (i32, i32) {
    %c0_i32 = arith.constant 0 : i32
    %c0_i32_0 = arith.constant 0 : i32
    %c0_i32_1 = arith.constant 0 : i32
    return %c0_i32, %c0_i32_0 : i32, i32
  }
  func.func @transform_3(%arg0: i32) -> (i32, i32) {
    %c0_i32 = arith.constant 0 : i32
    %c0_i32_0 = arith.constant 0 : i32
    %c0_i32_1 = arith.constant 0 : i32
    return %c0_i32, %c0_i32_0 : i32, i32
  }
  func.func @transform_4(%arg0: i32) -> (i32, i32) {
    %c0_i32 = arith.constant 0 : i32
    %c0_i32_0 = arith.constant 0 : i32
    %c0_i32_1 = arith.constant 0 : i32
    return %c0_i32, %c0_i32_0 : i32, i32
  }
}

</mosaic_0001>

<llo_original>
// kernel: tpu_custom_call.1
$region0: #{tpu_custom_call.1}
  #allocation0 [shape = 'u32[]', space=smem, size = 0x4, offset = 0x4, fixed_abs, tag = 'smem constant byte address 0x4 - core index']
  #allocation1 [shape = 'u32[144,128]{1,0:T(1,128)}', space=vmem, size = 0x12000, scoped, tag = 'internal scratch']
  %s0 = inlined_call_operand.hbm [shape: f32[16,32], index: 0, kind: input, shape index: {}]
  %s1 = inlined_call_operand.hbm [shape: f32[16,96], index: 1, kind: input, shape index: {}]
  %s2 = inlined_call_operand.hbm [shape: f32[33,96], index: 2, kind: input, shape index: {}]
  %s3 = inlined_call_operand.hbm [shape: f32[64,64], index: 3, kind: input, shape index: {}]
  %s4 = inlined_call_operand.hbm [shape: f32[16,32], index: 4, kind: output, shape index: {}]
  %s5 = sld [smem:[#allocation0]]
  $region42: #{tpu_custom_call.1} parent=0
    _
  %s7 = ssub.s32 1, %s5
  %s8 = scalar_select 0, %s7, %s5
  $region1: #{tpu_custom_call.1} parent=0
    #allocation2 [shape = 'u8[8192]{0}', space=vmem, size = 0x2000, scoped, tag = 'input window, operand 0, single buffered']
    #allocation3 [shape = 's32[1]{0}', space=sflag, size = 0x4, scoped, tag = 'scoped memory for tpu_custom_call.1']
    #allocation4 [shape = 's32[1]{0}', space=sflag, size = 0x4, scoped, tag = 'scoped memory for tpu_custom_call.1']
    #allocation5 [shape = 'u8[8192]{0}', space=vmem, size = 0x2000, scoped, tag = 'input window, operand 1, single buffered']
    #allocation6 [shape = 's32[1]{0}', space=sflag, size = 0x4, scoped, tag = 'scoped memory for tpu_custom_call.1']
    #allocation7 [shape = 'u8[20480]{0}', space=vmem, size = 0x5000, scoped, tag = 'input window, operand 2, single buffered']
    #allocation8 [shape = 'u8[32768]{0}', space=vmem, size = 0x8000, scoped, tag = 'input window, operand 3, single buffered']
    #allocation9 [shape = 's32[1]{0}', space=sflag, size = 0x4, scoped, tag = 'scoped memory for tpu_custom_call.1']
    #allocation10 [shape = 'u8[8192]{0}', space=vmem, size = 0x2000, scoped, tag = 'output window, operand 0, single buffered']
    %9 = vsyncpa [#allocation3], 0
    %10 = vsyncpa [#allocation6], 0
    %11 = vsyncpa [#allocation9], 0
    %12 = vsyncpa [#allocation4], 0
    // Predicated region
    $region2: #{tpu_custom_call.1} parent=1 // pred_check
      _
    $region3: #{tpu_custom_call.1} parent=1 // pred_check_branch
      %14 = sbr.rel (0) target = $region5
    $region4: #{tpu_custom_call.1} parent=1 // pred_region
      %s16 = ssub.s32 256, 256
      %17 = vsyncadd [#allocation3], %s16
      %s18 = sshll.u32 [#allocation2], 4
      %s19 = int_to_ptr.vmem [resolvable:$true] %s18
      %24 = dma.hbm_to_vmem [thread:$0]  %s0, 256, %s19, [#allocation3], 128, 128, 8
    $region5: #{tpu_custom_call.1} parent=1 // pred_fallthru
      _
    // Predicated region
    $region6: #{tpu_custom_call.1} parent=1 // pred_check
      _
    $region7: #{tpu_custom_call.1} parent=1 // pred_check_branch
      %26 = sbr.rel (0) target = $region9
    $region8: #{tpu_custom_call.1} parent=1 // pred_region
      %s28 = ssub.s32 256, 256
      %29 = vsyncadd [#allocation6], %s28
      %s30 = sshll.u32 [#allocation5], 4
      %s31 = int_to_ptr.vmem [resolvable:$true] %s30
      %36 = dma.hbm_to_vmem [thread:$0]  %s1, 256, %s31, [#allocation6], 128, 128, 8
    $region9: #{tpu_custom_call.1} parent=1 // pred_fallthru
      _
    // Predicated region
    $region10: #{tpu_custom_call.1} parent=1 // pred_check
      _
    $region11: #{tpu_custom_call.1} parent=1 // pred_check_branch
      %38 = sbr.rel (0) target = $region13
    $region12: #{tpu_custom_call.1} parent=1 // pred_region
      %s40 = ssub.s32 640, 640
      %41 = vsyncadd [#allocation6], %s40
      %s42 = sshll.u32 [#allocation7], 4
      %s43 = int_to_ptr.vmem [resolvable:$true] %s42
      %48 = dma.hbm_to_vmem [thread:$0]  %s2, 640, %s43, [#allocation6], 128, 128, 8
    $region13: #{tpu_custom_call.1} parent=1 // pred_fallthru
      _
    // Predicated region
    $region14: #{tpu_custom_call.1} parent=1 // pred_check
      _
    $region15: #{tpu_custom_call.1} parent=1 // pred_check_branch
      %50 = sbr.rel (0) target = $region17
    $region16: #{tpu_custom_call.1} parent=1 // pred_region
      %s52 = ssub.s32 1024, 1024
      %53 = vsyncadd [#allocation9], %s52
      %s54 = sshll.u32 [#allocation8], 4
      %s55 = int_to_ptr.vmem [resolvable:$true] %s54
      %60 = dma.hbm_to_vmem [thread:$0]  %s3, 1024, %s55, [#allocation9], 128, 128, 8
    $region17: #{tpu_custom_call.1} parent=1 // pred_fallthru
      _
    // Predicated region
    $region18: #{tpu_custom_call.1} parent=1 // pred_check
      _
    $region19: #{tpu_custom_call.1} parent=1 // pred_check_branch
      %62 = sbr.rel (0) target = $region21
    $region20: #{tpu_custom_call.1} parent=1 // pred_region
      %63 = dma.done [#allocation3], 256
    $region21: #{tpu_custom_call.1} parent=1 // pred_fallthru
      _
    // Predicated region
    $region22: #{tpu_custom_call.1} parent=1 // pred_check
      _
    $region23: #{tpu_custom_call.1} parent=1 // pred_check_branch
      %65 = sbr.rel (0) target = $region25
    $region24: #{tpu_custom_call.1} parent=1 // pred_region
      %66 = dma.done [#allocation6], 256
    $region25: #{tpu_custom_call.1} parent=1 // pred_fallthru
      _
    // Predicated region
    $region26: #{tpu_custom_call.1} parent=1 // pred_check
      _
    $region27: #{tpu_custom_call.1} parent=1 // pred_check_branch
      %68 = sbr.rel (0) target = $region29
    $region28: #{tpu_custom_call.1} parent=1 // pred_region
      %69 = dma.done [#allocation6], 640
    $region29: #{tpu_custom_call.1} parent=1 // pred_fallthru
      _
    // Predicated region
    $region30: #{tpu_custom_call.1} parent=1 // pred_check
      _
    $region31: #{tpu_custom_call.1} parent=1 // pred_check_branch
      %71 = sbr.rel (0) target = $region33
    $region32: #{tpu_custom_call.1} parent=1 // pred_region
      %72 = dma.done [#allocation9], 1024
    $region33: #{tpu_custom_call.1} parent=1 // pred_fallthru
      _
    %v73 = vld [vmem:[#allocation7] sm:$0xff]
    %v74 = vld [vmem:[#allocation7 + $0x8] sm:$0xff]
    %v75 = vld [vmem:[#allocation7 + $0x10] sm:$0xff]
    %v76 = vld [vmem:[#allocation7 + $0x18] sm:$0xff]
    %v77 = vld [vmem:[#allocation7 + $0x20] sm:$0x1]
    %v78 = vld [vmem:[#allocation2] sm:$0xff]
    %v79 = vld [vmem:[#allocation2 + $0x8] sm:$0xff]
    %v80 = vlaneseq
    %v81 = vshrl.u32 %v80, 7
    %v82 = vsub.s32 0, %v81
    %v83 = vrot.slane %v77, %v82
    %vm84 = vcmask 261120
    %v86 = vsel %vm84, %v78, 0
    %v89 = vsel %vm84, %v79, 0
    %91 = vmatprep.subr.mxu0 0.0
    %92 = vmatpush1.msra.mxu0 %v73
    %93 = vmatprep.subr.mxu0 0.0
    %94 = vmatpush1.msra.mxu0 %v74
    %95 = vmatprep.subr.mxu0 0.0
    %96 = vmatpush1.msra.mxu0 %v75
    %97 = vmatprep.subr.mxu0 0.0
    %98 = vmatpush1.msra.mxu0 %v76
    %99 = vmatprep.subr.mxu0 0.0
    %100 = vmatpush1.msra.mxu0 0.0
    %101 = vmatprep.subr.mxu0 0.0
    %102 = vmatpush1.msra.mxu0 0.0
    %103 = vmatprep.subr.mxu0 0.0
    %104 = vmatpush1.msra.mxu0 0.0
    %105 = vmatprep.subr.mxu0 0.0
    %106 = vmatpush1.msra.mxu0 0.0
    %107 = vmatprep.subr.mxu0 0.0
    %108 = vmatpush1.msra.mxu0 0.0
    %109 = vmatprep.subr.mxu0 0.0
    %110 = vmatpush1.msra.mxu0 0.0
    %111 = vmatprep.subr.mxu0 0.0
    %112 = vmatpush1.msra.mxu0 0.0
    %113 = vmatprep.subr.mxu0 0.0
    %114 = vmatpush1.msra.mxu0 0.0
    %115 = vmatprep.subr.mxu0 0.0
    %116 = vmatpush1.msra.mxu0 0.0
    %117 = vmatprep.subr.mxu0 0.0
    %118 = vmatpush1.msra.mxu0 0.0
    %119 = vmatprep.subr.mxu0 0.0
    %120 = vmatpush1.msra.mxu0 0.0
    %121 = vmatprep.subr.mxu0 0.0
    %122 = vmatpush1.msra.mxu0 0.0
    %123 = vmatprep.subr.mxu0 0.0
    %124 = vmatpush1.msra.mxu0 0.0
    %125 = vmatprep.subr.mxu0 0.0
    %126 = vmatpush1.msra.mxu0 0.0
    %127 = vmatprep.subr.mxu0 0.0
    %128 = vmatpush1.msra.mxu0 0.0
    %129 = vmatprep.subr.mxu0 0.0
    %130 = vmatpush1.msra.mxu0 0.0
    %131 = vmatprep.subr.mxu0 0.0
    %132 = vmatpush1.msra.mxu0 0.0
    %133 = vmatprep.subr.mxu0 0.0
    %134 = vmatpush1.msra.mxu0 0.0
    %135 = vmatprep.subr.mxu0 0.0
    %136 = vmatpush1.msra.mxu0 0.0
    %137 = vmatprep.subr.mxu0 0.0
    %138 = vmatpush1.msra.mxu0 0.0
    %139 = vmatprep.subr.mxu0 0.0
    %140 = vmatpush1.msra.mxu0 0.0
    %141 = vmatprep.subr.mxu0 0.0
    %142 = vmatpush1.msra.mxu0 0.0
    %143 = vmatprep.subr.mxu0 0.0
    %144 = vmatpush1.msra.mxu0 0.0
    %145 = vmatprep.subr.mxu0 0.0
    %146 = vmatpush1.msra.mxu0 0.0
    %147 = vmatprep.subr.mxu0 0.0
    %148 = vmatpush1.msra.mxu0 0.0
    %149 = vmatprep.subr.mxu0 0.0
    %150 = vmatpush1.msra.mxu0 0.0
    %151 = vmatprep.subr.mxu0 0.0
    %152 = vmatpush1.msra.mxu0 0.0
    %153 = vmatprep.subr.mxu0 0.0
    %154 = vmatpush1.msra.mxu0 0.0
    %155 = vmatprep.mubr.f32.mxu0 0.0
    %156 = vmatmul.mubr.f32.gmra.mrb[0].mxu0 %v86
    %v157 = vpop.f32.mrb[0].mxu0
    %v158 = vadd.f32 %v83, %v157
    %v159 = vpop.f32.mrb[0].mxu0
    %160 = vmatprep.mubr.f32.mxu0 0.0
    %161 = vmatmul.mubr.f32.gmra.mrb[0].mxu0 %v89
    %v162 = vpop.f32.mrb[0].mxu0
    %v163 = vadd.f32 %v83, %v162
    %v164 = vpop.f32.mrb[0].mxu0
    %165 = vdwg.mxu0
    %v166 = vld [vmem:[#allocation5] sm:$0xff]
    %v167 = vld [vmem:[#allocation5 + $0x8] sm:$0xff]
    %v168 = vmul.f32 %v158, %v166
    %v169 = vmul.f32 %v163, %v167
    %v170 = vmul.f32 %v168, %v168
    %v171 = vmul.f32 %v169, %v169
    %v172 = vld [vmem:[#allocation8] sm:$0xff]
    %v173 = vld [vmem:[#allocation8 + $0x8] sm:$0xff]
    %v174 = vld [vmem:[#allocation8 + $0x10] sm:$0xff]
    %v175 = vld [vmem:[#allocation8 + $0x18] sm:$0xff]
    %v176 = vld [vmem:[#allocation8 + $0x20] sm:$0xff]
    %v177 = vld [vmem:[#allocation8 + $0x28] sm:$0xff]
    %v178 = vld [vmem:[#allocation8 + $0x30] sm:$0xff]
    %v179 = vld [vmem:[#allocation8 + $0x38] sm:$0xff]
    %vm180 = vcmask 523264
    %v182 = vsel %vm180, %v170, 0
    %v185 = vsel %vm180, %v171, 0
    %187 = vmatprep.subr.mxu0 0.0
    %188 = vmatpush1.msra.mxu0 %v172
    %189 = vmatprep.subr.mxu0 0.0
    %190 = vmatpush1.msra.mxu0 %v173
    %191 = vmatprep.subr.mxu0 0.0
    %192 = vmatpush1.msra.mxu0 %v174
    %193 = vmatprep.subr.mxu0 0.0
    %194 = vmatpush1.msra.mxu0 %v175
    %195 = vmatprep.subr.mxu0 0.0
    %196 = vmatpush1.msra.mxu0 %v176
    %197 = vmatprep.subr.mxu0 0.0
    %198 = vmatpush1.msra.mxu0 %v177
    %199 = vmatprep.subr.mxu0 0.0
    %200 = vmatpush1.msra.mxu0 %v178
    %201 = vmatprep.subr.mxu0 0.0
    %202 = vmatpush1.msra.mxu0 %v179
    %203 = vmatprep.subr.mxu0 0.0
    %204 = vmatpush1.msra.mxu0 0.0
    %205 = vmatprep.subr.mxu0 0.0
    %206 = vmatpush1.msra.mxu0 0.0
    %207 = vmatprep.subr.mxu0 0.0
    %208 = vmatpush1.msra.mxu0 0.0
    %209 = vmatprep.subr.mxu0 0.0
    %210 = vmatpush1.msra.mxu0 0.0
    %211 = vmatprep.subr.mxu0 0.0
    %212 = vmatpush1.msra.mxu0 0.0
    %213 = vmatprep.subr.mxu0 0.0
    %214 = vmatpush1.msra.mxu0 0.0
    %215 = vmatprep.subr.mxu0 0.0
    %216 = vmatpush1.msra.mxu0 0.0
    %217 = vmatprep.subr.mxu0 0.0
    %218 = vmatpush1.msra.mxu0 0.0
    %219 = vmatprep.subr.mxu0 0.0
    %220 = vmatpush1.msra.mxu0 0.0
    %221 = vmatprep.subr.mxu0 0.0
    %222 = vmatpush1.msra.mxu0 0.0
    %223 = vmatprep.subr.mxu0 0.0
    %224 = vmatpush1.msra.mxu0 0.0
    %225 = vmatprep.subr.mxu0 0.0
    %226 = vmatpush1.msra.mxu0 0.0
    %227 = vmatprep.subr.mxu0 0.0
    %228 = vmatpush1.msra.mxu0 0.0
    %229 = vmatprep.subr.mxu0 0.0
    %230 = vmatpush1.msra.mxu0 0.0
    %231 = vmatprep.subr.mxu0 0.0
    %232 = vmatpush1.msra.mxu0 0.0
    %233 = vmatprep.subr.mxu0 0.0
    %234 = vmatpush1.msra.mxu0 0.0
    %235 = vmatprep.subr.mxu0 0.0
    %236 = vmatpush1.msra.mxu0 0.0
    %237 = vmatprep.subr.mxu0 0.0
    %238 = vmatpush1.msra.mxu0 0.0
    %239 = vmatprep.subr.mxu0 0.0
    %240 = vmatpush1.msra.mxu0 0.0
    %241 = vmatprep.subr.mxu0 0.0
    %242 = vmatpush1.msra.mxu0 0.0
    %243 = vmatprep.subr.mxu0 0.0
    %244 = vmatpush1.msra.mxu0 0.0
    %245 = vmatprep.subr.mxu0 0.0
    %246 = vmatpush1.msra.mxu0 0.0
    %247 = vmatprep.subr.mxu0 0.0
    %248 = vmatpush1.msra.mxu0 0.0
    %249 = vmatprep.subr.mxu0 0.0
    %250 = vmatpush1.msra.mxu0 0.0
    %251 = vmatprep.mubr.f32.mxu0 0.0
    %252 = vmatmul.mubr.f32.gmra.mrb[0].mxu0 %v182
    %v253 = vpop.f32.mrb[0].mxu0
    %v254 = vadd.f32 0.0, %v253
    %v255 = vpop.f32.mrb[0].mxu0
    %256 = vmatprep.mubr.f32.mxu0 0.0
    %257 = vmatmul.mubr.f32.gmra.mrb[0].mxu0 %v185
    %v258 = vpop.f32.mrb[0].mxu0
    %v259 = vadd.f32 0.0, %v258
    %v260 = vpop.f32.mrb[0].mxu0
    %261 = vdwg.mxu0
    %v262 = vmax.f32 %v254, 1e-24
    %v263 = vmax.f32 %v259, 1e-24
    %v264 = vrsqrt.pop %v262
    %v265 = vrsqrt.pop %v263
    %v266 = vmul.f32 %v168, %v264
    %v267 = vmul.f32 %v169, %v265
    %v268 = vld [vmem:[#allocation8] sm:$0xff]
    %v269 = vld [vmem:[#allocation8 + $0x8] sm:$0xff]
    %v270 = vld [vmem:[#allocation8 + $0x10] sm:$0xff]
    %v271 = vld [vmem:[#allocation8 + $0x18] sm:$0xff]
    %273 = vrot.lane.b32.xlu0 %v266, 96
    %v274 = vpop.permute.xlu0 %273
    %276 = vxpose.xlu0.b32.start [1/16] %v274, 128
    %277 = vxpose.xlu0.b32.cont [2/16] 0.0, 128
    %278 = vxpose.xlu0.b32.cont [3/16] 0.0, 128
    %279 = vxpose.xlu0.b32.cont [4/16] 0.0, 128
    %280 = vxpose.xlu0.b32.cont [5/16] 0.0, 128
    %281 = vxpose.xlu0.b32.cont [6/16] 0.0, 128
    %282 = vxpose.xlu0.b32.cont [7/16] 0.0, 128
    %283 = vxpose.xlu0.b32.cont [8/16] 0.0, 128
    %284 = vxpose.xlu0.b32.cont [9/16] 0.0, 128
    %285 = vxpose.xlu0.b32.cont [10/16] 0.0, 128
    %286 = vxpose.xlu0.b32.cont [11/16] 0.0, 128
    %287 = vxpose.xlu0.b32.cont [12/16] 0.0, 128
    %288 = vxpose.xlu0.b32.cont [13/16] 0.0, 128
    %289 = vxpose.xlu0.b32.cont [14/16] 0.0, 128
    %290 = vxpose.xlu0.b32.cont [15/16] 0.0, 128
    %291 = vxpose.xlu0.b32.end [16/16] 0.0, 128
    %v292 = vpop.trf.xlu0
    %v293 = vpop.trf.xlu0
    %v294 = vpop.trf.xlu0
    %v295 = vpop.trf.xlu0
    %v296 = vpop.trf.xlu0
    %v297 = vpop.trf.xlu0
    %v298 = vpop.trf.xlu0
    %v299 = vpop.trf.xlu0
    %v300 = vpop.trf.xlu0
    %v301 = vpop.trf.xlu0
    %v302 = vpop.trf.xlu0
    %v303 = vpop.trf.xlu0
    %v304 = vpop.trf.xlu0
    %v305 = vpop.trf.xlu0
    %v306 = vpop.trf.xlu0
    %v307 = vpop.trf.xlu0
    %309 = vrot.lane.b32.xlu0 %v168, 64
    %v310 = vpop.permute.xlu0 %309
    %vm312 = vcmask 64512
    %v314 = vsel %vm312, %v292, 0
    %v317 = vsel %vm312, %v293, 0
    %v320 = vsel %vm312, %v294, 0
    %v323 = vsel %vm312, %v295, 0
    %325 = vmatprep.subr.mxu0 0.0
    %326 = vmatpush1.msra.mxu0 %v310
    %327 = vmatprep.subr.mxu0 0.0
    %328 = vmatpush1.msra.mxu0 0.0
    %329 = vmatprep.subr.mxu0 0.0
    %330 = vmatpush1.msra.mxu0 0.0
    %331 = vmatprep.subr.mxu0 0.0
    %332 = vmatpush1.msra.mxu0 0.0
    %333 = vmatprep.subr.mxu0 0.0
    %334 = vmatpush1.msra.mxu0 0.0
    %335 = vmatprep.subr.mxu0 0.0
    %336 = vmatpush1.msra.mxu0 0.0
    %337 = vmatprep.subr.mxu0 0.0
    %338 = vmatpush1.msra.mxu0 0.0
    %339 = vmatprep.subr.mxu0 0.0
    %340 = vmatpush1.msra.mxu0 0.0
    %341 = vmatprep.subr.mxu0 0.0
    %342 = vmatpush1.msra.mxu0 0.0
    %343 = vmatprep.subr.mxu0 0.0
    %344 = vmatpush1.msra.mxu0 0.0
    %345 = vmatprep.subr.mxu0 0.0
    %346 = vmatpush1.msra.mxu0 0.0
    %347 = vmatprep.subr.mxu0 0.0
    %348 = vmatpush1.msra.mxu0 0.0
    %349 = vmatprep.subr.mxu0 0.0
    %350 = vmatpush1.msra.mxu0 0.0
    %351 = vmatprep.subr.mxu0 0.0
    %352 = vmatpush1.msra.mxu0 0.0
    %353 = vmatprep.subr.mxu0 0.0
    %354 = vmatpush1.msra.mxu0 0.0
    %355 = vmatprep.subr.mxu0 0.0
    %356 = vmatpush1.msra.mxu0 0.0
    %357 = vmatprep.subr.mxu0 0.0
    %358 = vmatpush1.msra.mxu0 0.0
    %359 = vmatprep.subr.mxu0 0.0
    %360 = vmatpush1.msra.mxu0 0.0
    %361 = vmatprep.subr.mxu0 0.0
    %362 = vmatpush1.msra.mxu0 0.0
    %363 = vmatprep.subr.mxu0 0.0
    %364 = vmatpush1.msra.mxu0 0.0
    %365 = vmatprep.subr.mxu0 0.0
    %366 = vmatpush1.msra.mxu0 0.0
    %367 = vmatprep.subr.mxu0 0.0
    %368 = vmatpush1.msra.mxu0 0.0
    %369 = vmatprep.subr.mxu0 0.0
    %370 = vmatpush1.msra.mxu0 0.0
    %371 = vmatprep.subr.mxu0 0.0
    %372 = vmatpush1.msra.mxu0 0.0
    %373 = vmatprep.subr.mxu0 0.0
    %374 = vmatpush1.msra.mxu0 0.0
    %375 = vmatprep.subr.mxu0 0.0
    %376 = vmatpush1.msra.mxu0 0.0
    %377 = vmatprep.subr.mxu0 0.0
    %378 = vmatpush1.msra.mxu0 0.0
    %379 = vmatprep.subr.mxu0 0.0
    %380 = vmatpush1.msra.mxu0 0.0
    %381 = vmatprep.subr.mxu0 0.0
    %382 = vmatpush1.msra.mxu0 0.0
    %383 = vmatprep.subr.mxu0 0.0
    %384 = vmatpush1.msra.mxu0 0.0
    %385 = vmatprep.subr.mxu0 0.0
    %386 = vmatpush1.msra.mxu0 0.0
    %387 = vmatprep.subr.mxu0 0.0
    %388 = vmatpush1.msra.mxu0 0.0
    %389 = vmatprep.mubr.f32.mxu0 0.0
    %390 = vmatmul.mubr.f32.gmra.mrb[0].mxu0 %v314
    %v391 = vpop.f32.mrb[0].mxu0
    %v392 = vadd.f32 0.0, %v391
    %v393 = vpop.f32.mrb[0].mxu0
    %394 = vmatprep.mubr.f32.mxu0 0.0
    %395 = vmatmul.mubr.f32.gmra.mrb[0].mxu0 %v317
    %v396 = vpop.f32.mrb[0].mxu0
    %v397 = vadd.f32 0.0, %v396
    %v398 = vpop.f32.mrb[0].mxu0
    %399 = vmatprep.mubr.f32.mxu0 0.0
    %400 = vmatmul.mubr.f32.gmra.mrb[0].mxu0 %v320
    %v401 = vpop.f32.mrb[0].mxu0
    %v402 = vadd.f32 0.0, %v401
    %v403 = vpop.f32.mrb[0].mxu0
    %404 = vmatprep.mubr.f32.mxu0 0.0
    %405 = vmatmul.mubr.f32.gmra.mrb[0].mxu0 %v323
    %v406 = vpop.f32.mrb[0].mxu0
    %v407 = vadd.f32 0.0, %v406
    %v408 = vpop.f32.mrb[0].mxu0
    %409 = vdwg.mxu0
    %v410 = vmul.f32 %v392, %v268
    %v411 = vmul.f32 %v397, %v269
    %v412 = vmul.f32 %v402, %v270
    %v413 = vmul.f32 %v407, %v271
    %v414 = vsel %vm84, %v266, 0
    %416 = vmatprep.subr.mxu0 0.0
    %417 = vmatpush1.msra.mxu0 %v410
    %418 = vmatprep.subr.mxu0 0.0
    %419 = vmatpush1.msra.mxu0 %v411
    %420 = vmatprep.subr.mxu0 0.0
    %421 = vmatpush1.msra.mxu0 %v412
    %422 = vmatprep.subr.mxu0 0.0
    %423 = vmatpush1.msra.mxu0 %v413
    %424 = vmatprep.subr.mxu0 0.0
    %425 = vmatpush1.msra.mxu0 0.0
    %426 = vmatprep.subr.mxu0 0.0
    %427 = vmatpush1.msra.mxu0 0.0
    %428 = vmatprep.subr.mxu0 0.0
    %429 = vmatpush1.msra.mxu0 0.0
    %430 = vmatprep.subr.mxu0 0.0
    %431 = vmatpush1.msra.mxu0 0.0
    %432 = vmatprep.subr.mxu0 0.0
    %433 = vmatpush1.msra.mxu0 0.0
    %434 = vmatprep.subr.mxu0 0.0
    %435 = vmatpush1.msra.mxu0 0.0
    %436 = vmatprep.subr.mxu0 0.0
    %437 = vmatpush1.msra.mxu0 0.0
    %438 = vmatprep.subr.mxu0 0.0
    %439 = vmatpush1.msra.mxu0 0.0
    %440 = vmatprep.subr.mxu0 0.0
    %441 = vmatpush1.msra.mxu0 0.0
    %442 = vmatprep.subr.mxu0 0.0
    %443 = vmatpush1.msra.mxu0 0.0
    %444 = vmatprep.subr.mxu0 0.0
    %445 = vmatpush1.msra.mxu0 0.0
    %446 = vmatprep.subr.mxu0 0.0
    %447 = vmatpush1.msra.mxu0 0.0
    %448 = vmatprep.subr.mxu0 0.0
    %449 = vmatpush1.msra.mxu0 0.0
    %450 = vmatprep.subr.mxu0 0.0
    %451 = vmatpush1.msra.mxu0 0.0
    %452 = vmatprep.subr.mxu0 0.0
    %453 = vmatpush1.msra.mxu0 0.0
    %454 = vmatprep.subr.mxu0 0.0
    %455 = vmatpush1.msra.mxu0 0.0
    %456 = vmatprep.subr.mxu0 0.0
    %457 = vmatpush1.msra.mxu0 0.0
    %458 = vmatprep.subr.mxu0 0.0
    %459 = vmatpush1.msra.mxu0 0.0
    %460 = vmatprep.subr.mxu0 0.0
    %461 = vmatpush1.msra.mxu0 0.0
    %462 = vmatprep.subr.mxu0 0.0
    %463 = vmatpush1.msra.mxu0 0.0
    %464 = vmatprep.subr.mxu0 0.0
    %465 = vmatpush1.msra.mxu0 0.0
    %466 = vmatprep.subr.mxu0 0.0
    %467 = vmatpush1.msra.mxu0 0.0
    %468 = vmatprep.subr.mxu0 0.0
    %469 = vmatpush1.msra.mxu0 0.0
    %470 = vmatprep.subr.mxu0 0.0
    %471 = vmatpush1.msra.mxu0 0.0
    %472 = vmatprep.subr.mxu0 0.0
    %473 = vmatpush1.msra.mxu0 0.0
    %474 = vmatprep.subr.mxu0 0.0
    %475 = vmatpush1.msra.mxu0 0.0
    %476 = vmatprep.subr.mxu0 0.0
    %477 = vmatpush1.msra.mxu0 0.0
    %478 = vmatprep.subr.mxu0 0.0
    %479 = vmatpush1.msra.mxu0 0.0
    %480 = vmatprep.mubr.f32.mxu0 0.0
    %481 = vmatmul.mubr.f32.gmra.mrb[0].mxu0 %v414
    %v482 = vpop.f32.mrb[0].mxu0
    %v483 = vadd.f32 0.0, %v482
    %v484 = vpop.f32.mrb[0].mxu0
    %485 = vdwg.mxu0
    %487 = vrot.lane.b32.xlu0 %v267, 96
    %v488 = vpop.permute.xlu0 %487
    %490 = vxpose.xlu0.b32.start [1/16] %v488, 128
    %491 = vxpose.xlu0.b32.cont [2/16] 0.0, 128
    %492 = vxpose.xlu0.b32.cont [3/16] 0.0, 128
    %493 = vxpose.xlu0.b32.cont [4/16] 0.0, 128
    %494 = vxpose.xlu0.b32.cont [5/16] 0.0, 128
    %495 = vxpose.xlu0.b32.cont [6/16] 0.0, 128
    %496 = vxpose.xlu0.b32.cont [7/16] 0.0, 128
    %497 = vxpose.xlu0.b32.cont [8/16] 0.0, 128
    %498 = vxpose.xlu0.b32.cont [9/16] 0.0, 128
    %499 = vxpose.xlu0.b32.cont [10/16] 0.0, 128
    %500 = vxpose.xlu0.b32.cont [11/16] 0.0, 128
    %501 = vxpose.xlu0.b32.cont [12/16] 0.0, 128
    %502 = vxpose.xlu0.b32.cont [13/16] 0.0, 128
    %503 = vxpose.xlu0.b32.cont [14/16] 0.0, 128
    %504 = vxpose.xlu0.b32.cont [15/16] 0.0, 128
    %505 = vxpose.xlu0.b32.end [16/16] 0.0, 128
    %v506 = vpop.trf.xlu0
    %v507 = vpop.trf.xlu0
    %v508 = vpop.trf.xlu0
    %v509 = vpop.trf.xlu0
    %v510 = vpop.trf.xlu0
    %v511 = vpop.trf.xlu0
    %v512 = vpop.trf.xlu0
    %v513 = vpop.trf.xlu0
    %v514 = vpop.trf.xlu0
    %v515 = vpop.trf.xlu0
    %v516 = vpop.trf.xlu0
    %v517 = vpop.trf.xlu0
    %v518 = vpop.trf.xlu0
    %v519 = vpop.trf.xlu0
    %v520 = vpop.trf.xlu0
    %v521 = vpop.trf.xlu0
    %523 = vrot.lane.b32.xlu0 %v169, 64
    %v524 = vpop.permute.xlu0 %523
    %v527 = vsel %vm312, %v506, 0
    %v530 = vsel %vm312, %v507, 0
    %v533 = vsel %vm312, %v508, 0
    %v536 = vsel %vm312, %v509, 0
    %538 = vmatprep.subr.mxu0 0.0
    %539 = vmatpush1.msra.mxu0 %v524
    %540 = vmatprep.subr.mxu0 0.0
    %541 = vmatpush1.msra.mxu0 0.0
    %542 = vmatprep.subr.mxu0 0.0
    %543 = vmatpush1.msra.mxu0 0.0
    %544 = vmatprep.subr.mxu0 0.0
    %545 = vmatpush1.msra.mxu0 0.0
    %546 = vmatprep.subr.mxu0 0.0
    %547 = vmatpush1.msra.mxu0 0.0
    %548 = vmatprep.subr.mxu0 0.0
    %549 = vmatpush1.msra.mxu0 0.0
    %550 = vmatprep.subr.mxu0 0.0
    %551 = vmatpush1.msra.mxu0 0.0
    %552 = vmatprep.subr.mxu0 0.0
    %553 = vmatpush1.msra.mxu0 0.0
    %554 = vmatprep.subr.mxu0 0.0
    %555 = vmatpush1.msra.mxu0 0.0
    %556 = vmatprep.subr.mxu0 0.0
    %557 = vmatpush1.msra.mxu0 0.0
    %558 = vmatprep.subr.mxu0 0.0
    %559 = vmatpush1.msra.mxu0 0.0
    %560 = vmatprep.subr.mxu0 0.0
    %561 = vmatpush1.msra.mxu0 0.0
    %562 = vmatprep.subr.mxu0 0.0
    %563 = vmatpush1.msra.mxu0 0.0
    %564 = vmatprep.subr.mxu0 0.0
    %565 = vmatpush1.msra.mxu0 0.0
    %566 = vmatprep.subr.mxu0 0.0
    %567 = vmatpush1.msra.mxu0 0.0
    %568 = vmatprep.subr.mxu0 0.0
    %569 = vmatpush1.msra.mxu0 0.0
    %570 = vmatprep.subr.mxu0 0.0
    %571 = vmatpush1.msra.mxu0 0.0
    %572 = vmatprep.subr.mxu0 0.0
    %573 = vmatpush1.msra.mxu0 0.0
    %574 = vmatprep.subr.mxu0 0.0
    %575 = vmatpush1.msra.mxu0 0.0
    %576 = vmatprep.subr.mxu0 0.0
    %577 = vmatpush1.msra.mxu0 0.0
    %578 = vmatprep.subr.mxu0 0.0
    %579 = vmatpush1.msra.mxu0 0.0
    %580 = vmatprep.subr.mxu0 0.0
    %581 = vmatpush1.msra.mxu0 0.0
    %582 = vmatprep.subr.mxu0 0.0
    %583 = vmatpush1.msra.mxu0 0.0
    %584 = vmatprep.subr.mxu0 0.0
    %585 = vmatpush1.msra.mxu0 0.0
    %586 = vmatprep.subr.mxu0 0.0
    %587 = vmatpush1.msra.mxu0 0.0
    %588 = vmatprep.subr.mxu0 0.0
    %589 = vmatpush1.msra.mxu0 0.0
    %590 = vmatprep.subr.mxu0 0.0
    %591 = vmatpush1.msra.mxu0 0.0
    %592 = vmatprep.subr.mxu0 0.0
    %593 = vmatpush1.msra.mxu0 0.0
    %594 = vmatprep.subr.mxu0 0.0
    %595 = vmatpush1.msra.mxu0 0.0
    %596 = vmatprep.subr.mxu0 0.0
    %597 = vmatpush1.msra.mxu0 0.0
    %598 = vmatprep.subr.mxu0 0.0
    %599 = vmatpush1.msra.mxu0 0.0
    %600 = vmatprep.subr.mxu0 0.0
    %601 = vmatpush1.msra.mxu0 0.0
    %602 = vmatprep.mubr.f32.mxu0 0.0
    %603 = vmatmul.mubr.f32.gmra.mrb[0].mxu0 %v527
    %v604 = vpop.f32.mrb[0].mxu0
    %v605 = vadd.f32 0.0, %v604
    %v606 = vpop.f32.mrb[0].mxu0
    %607 = vmatprep.mubr.f32.mxu0 0.0
    %608 = vmatmul.mubr.f32.gmra.mrb[0].mxu0 %v530
    %v609 = vpop.f32.mrb[0].mxu0
    %v610 = vadd.f32 0.0, %v609
    %v611 = vpop.f32.mrb[0].mxu0
    %612 = vmatprep.mubr.f32.mxu0 0.0
    %613 = vmatmul.mubr.f32.gmra.mrb[0].mxu0 %v533
    %v614 = vpop.f32.mrb[0].mxu0
    %v615 = vadd.f32 0.0, %v614
    %v616 = vpop.f32.mrb[0].mxu0
    %617 = vmatprep.mubr.f32.mxu0 0.0
    %618 = vmatmul.mubr.f32.gmra.mrb[0].mxu0 %v536
    %v619 = vpop.f32.mrb[0].mxu0
    %v620 = vadd.f32 0.0, %v619
    %v621 = vpop.f32.mrb[0].mxu0
    %622 = vdwg.mxu0
    %v623 = vmul.f32 %v605, %v268
    %v624 = vmul.f32 %v610, %v269
    %v625 = vmul.f32 %v615, %v270
    %v626 = vmul.f32 %v620, %v271
    %v627 = vsel %vm84, %v267, 0
    %629 = vmatprep.subr.mxu0 0.0
    %630 = vmatpush1.msra.mxu0 %v623
    %631 = vmatprep.subr.mxu0 0.0
    %632 = vmatpush1.msra.mxu0 %v624
    %633 = vmatprep.subr.mxu0 0.0
    %634 = vmatpush1.msra.mxu0 %v625
    %635 = vmatprep.subr.mxu0 0.0
    %636 = vmatpush1.msra.mxu0 %v626
    %637 = vmatprep.subr.mxu0 0.0
    %638 = vmatpush1.msra.mxu0 0.0
    %639 = vmatprep.subr.mxu0 0.0
    %640 = vmatpush1.msra.mxu0 0.0
    %641 = vmatprep.subr.mxu0 0.0
    %642 = vmatpush1.msra.mxu0 0.0
    %643 = vmatprep.subr.mxu0 0.0
    %644 = vmatpush1.msra.mxu0 0.0
    %645 = vmatprep.subr.mxu0 0.0
    %646 = vmatpush1.msra.mxu0 0.0
    %647 = vmatprep.subr.mxu0 0.0
    %648 = vmatpush1.msra.mxu0 0.0
    %649 = vmatprep.subr.mxu0 0.0
    %650 = vmatpush1.msra.mxu0 0.0
    %651 = vmatprep.subr.mxu0 0.0
    %652 = vmatpush1.msra.mxu0 0.0
    %653 = vmatprep.subr.mxu0 0.0
    %654 = vmatpush1.msra.mxu0 0.0
    %655 = vmatprep.subr.mxu0 0.0
    %656 = vmatpush1.msra.mxu0 0.0
    %657 = vmatprep.subr.mxu0 0.0
    %658 = vmatpush1.msra.mxu0 0.0
    %659 = vmatprep.subr.mxu0 0.0
    %660 = vmatpush1.msra.mxu0 0.0
    %661 = vmatprep.subr.mxu0 0.0
    %662 = vmatpush1.msra.mxu0 0.0
    %663 = vmatprep.subr.mxu0 0.0
    %664 = vmatpush1.msra.mxu0 0.0
    %665 = vmatprep.subr.mxu0 0.0
    %666 = vmatpush1.msra.mxu0 0.0
    %667 = vmatprep.subr.mxu0 0.0
    %668 = vmatpush1.msra.mxu0 0.0
    %669 = vmatprep.subr.mxu0 0.0
    %670 = vmatpush1.msra.mxu0 0.0
    %671 = vmatprep.subr.mxu0 0.0
    %672 = vmatpush1.msra.mxu0 0.0
    %673 = vmatprep.subr.mxu0 0.0
    %674 = vmatpush1.msra.mxu0 0.0
    %675 = vmatprep.subr.mxu0 0.0
    %676 = vmatpush1.msra.mxu0 0.0
    %677 = vmatprep.subr.mxu0 0.0
    %678 = vmatpush1.msra.mxu0 0.0
    %679 = vmatprep.subr.mxu0 0.0
    %680 = vmatpush1.msra.mxu0 0.0
    %681 = vmatprep.subr.mxu0 0.0
    %682 = vmatpush1.msra.mxu0 0.0
    %683 = vmatprep.subr.mxu0 0.0
    %684 = vmatpush1.msra.mxu0 0.0
    %685 = vmatprep.subr.mxu0 0.0
    %686 = vmatpush1.msra.mxu0 0.0
    %687 = vmatprep.subr.mxu0 0.0
    %688 = vmatpush1.msra.mxu0 0.0
    %689 = vmatprep.subr.mxu0 0.0
    %690 = vmatpush1.msra.mxu0 0.0
    %691 = vmatprep.subr.mxu0 0.0
    %692 = vmatpush1.msra.mxu0 0.0
    %693 = vmatprep.mubr.f32.mxu0 0.0
    %694 = vmatmul.mubr.f32.gmra.mrb[0].mxu0 %v627
    %v695 = vpop.f32.mrb[0].mxu0
    %v696 = vadd.f32 0.0, %v695
    %v697 = vpop.f32.mrb[0].mxu0
    %698 = vdwg.mxu0
    %699 = vst.msk [vmem:[#allocation10] sm:$0xff] %vm84, %v483
    %700 = vst.msk [vmem:[#allocation10 + $0x8] sm:$0xff] %vm84, %v696
    // Predicated region
    $region34: #{tpu_custom_call.1} parent=1 // pred_check
      _
    $region35: #{tpu_custom_call.1} parent=1 // pred_check_branch
      %702 = sbr.rel (0) target = $region37
    $region36: #{tpu_custom_call.1} parent=1 // pred_region
      %s704 = ssub.s32 256, 256
      %705 = vsyncadd [#allocation4], %s704
      %s706 = sshll.u32 [#allocation10], 4
      %s707 = int_to_ptr.vmem [resolvable:$true] %s706
      %712 = dma.vmem_to_hbm [thread:$0]  %s707, 256, %s4, [#allocation4], 128, 128, 8
    $region37: #{tpu_custom_call.1} parent=1 // pred_fallthru
      _
    // Predicated region
    $region38: #{tpu_custom_call.1} parent=1 // pred_check
      _
    $region39: #{tpu_custom_call.1} parent=1 // pred_check_branch
      %714 = sbr.rel (0) target = $region41
    $region40: #{tpu_custom_call.1} parent=1 // pred_region
      %715 = dma.done [#allocation4], 256
    $region41: #{tpu_custom_call.1} parent=1 // pred_fallthru
      _
    %716 = vsyncpa [#allocation3], 1
    %717 = vsyncpa [#allocation6], 1
    %718 = vsyncpa [#allocation9], 1
    %719 = vsyncpa [#allocation4], 1

</llo_original>
